<compile_context>
chip_gen: v5e
topology: v5e:2x2
jax: 0.10.0
libtpu: 0.0.40
codegen_flags: <defaults>
</compile_context>

<pallas_src>
import functools
import math

import numpy as np
import jax
import jax.numpy as jnp
from jax import lax
from jax.experimental import pallas as pl
from jax.experimental.pallas import tpu as pltpu

# ---- small shapes consistent with the module ----
BATCH = 2
SEQ = 8
DIM = 32
HEADS = 2
DIM_HEAD = 16
INNER = HEADS * DIM_HEAD      # 32
NB_FEATURES = 32              # performer random-feature count m
EPS = 1e-4


# ----------------------------------------------------------------------------
# Fused Pallas kernel (single invocation, no grid)
# ----------------------------------------------------------------------------

def fused_performer_kernel(x_ref, wqkv_ref, proj_bd_ref, ones_h_ref,
                           wo_ref, bo_ref, o_ref, attn_ref, *, b, n, h, d, m):
    """Entire Performer SelfAttention forward in one kernel body.

    x_ref       : (b*n, dim)
    wqkv_ref    : (dim, 3*h*d)   merged to_q | to_k | to_v weight; d**-0.25
                                 normalizer pre-folded into the q/k columns
    proj_bd_ref : (h*d, h*m)     block-diagonal of proj.T (heads batched on lanes)
    ones_h_ref  : (h*d, h)       block-diagonal of ones columns (per-head sum-sq)
    wo_ref      : (h*d, dim)     to_out weight
    bo_ref      : (1, dim)       to_out bias
    o_ref       : (b*n, dim)     output
    attn_ref    : (b*n, h*d)     VMEM scratch for the merged-head attention result
    """
    inner = h * d
    bn = b * n
    ratio = m ** -0.5

    x = x_ref[...]                                                        # (bn, dim)

    # --- merged QKV projection; qkv biases are zero -> add skipped -------------
    qkv = jnp.dot(x, wqkv_ref[...], preferred_element_type=jnp.float32)  # (bn, 3*inner)
    q = qkv[:, 0:inner]
    k = qkv[:, inner:2 * inner]
    v = qkv[:, 2 * inner:3 * inner]

    # --- softmax-kernel random features: q and k stacked along sublanes so the
    #     MXU sees ONE 2*bn-row push for the feature projection and ONE for the
    #     per-head sum-of-squares --------------------------------------------
    qk = jnp.concatenate([q, k], axis=0)                                  # (2bn, inner)
    qk_dash = jnp.dot(qk, proj_bd_ref[...],
                      preferred_element_type=jnp.float32)                 # (2bn, h*m)
    qk_diag = 0.5 * jnp.dot(qk * qk, ones_h_ref[...],
                            preferred_element_type=jnp.float32)           # (2bn, h)

    q_dash = qk_dash[0:bn]
    k_dash = qk_dash[bn:2 * bn]
    q_diag = qk_diag[0:bn]
    k_diag = qk_diag[bn:2 * bn]

    # Global max over all (batch, head, position, feature) == torch.max(data_dash)
    # in softmax_kernel(is_query=False).  Valid because the call is grid-less.
    k_max = jnp.max(k_dash, axis=(0, 1), keepdims=True)                   # (1, 1)

    # --- per (batch, head) linear attention; b*h = 4 tiny blocks, unrolled ---
    for bb in range(b):
        rows = slice(bb * n, (bb + 1) * n)
        for hh in range(h):
            fcols = slice(hh * m, (hh + 1) * m)
            dcols = slice(hh * d, (hh + 1) * d)

            qd = q_dash[rows, fcols]                                      # (n, m)
            kd = k_dash[rows, fcols]                                      # (n, m)
            qdg = q_diag[rows, hh:hh + 1]                                 # (n, 1)
            kdg = k_diag[rows, hh:hh + 1]                                 # (n, 1)

            q_rowmax = jnp.max(qd, axis=-1, keepdims=True)                # (n, 1)
            q_feat = ratio * (jnp.exp(qd - qdg - q_rowmax) + EPS)         # (n, m)
            k_feat = ratio * (jnp.exp(kd - kdg - k_max) + EPS)            # (n, m)

            vh = v[rows, dcols]                                           # (n, d)
            k_cumsum = jnp.sum(k_feat, axis=0, keepdims=True)             # (1, m)
            denom = jnp.sum(q_feat * k_cumsum, axis=-1, keepdims=True)    # (n, 1)
            d_inv = pl.reciprocal(denom, approx=True)                     # EUP slot

            # contract k_feat's row axis with vh's row axis -> (m, d); no kf.T
            context = lax.dot_general(
                k_feat, vh, dimension_numbers=(((0,), (0,)), ((), ())),
                preferred_element_type=jnp.float32)
            attn_ref[rows, dcols] = (
                jnp.dot(q_feat, context, preferred_element_type=jnp.float32)
                * d_inv)

    # --- output projection (to_out) ---
    o_ref[...] = (jnp.dot(attn_ref[...], wo_ref[...],
                          preferred_element_type=jnp.float32) + bo_ref[...])


# ----------------------------------------------------------------------------
# Wrapper
# ----------------------------------------------------------------------------

@jax.jit
def performer_self_attention(x, fused):
    b, n, dim = x.shape
    kernel = functools.partial(fused_performer_kernel,
                               b=b, n=n, h=HEADS, d=DIM_HEAD, m=NB_FEATURES)
    out2d = pl.pallas_call(
        kernel,
        out_shape=jax.ShapeDtypeStruct((b * n, dim), jnp.float32),
        scratch_shapes=[pltpu.VMEM((b * n, HEADS * DIM_HEAD), jnp.float32)],
    )(x.reshape(b * n, dim), fused["wqkv"], fused["proj_bd"],
      fused["ones_h"], fused["wo"], fused["bo2d"])
    # nn.Dropout(p=0.0) in eval mode is the identity -- omitted.
    return out2d.reshape(b, n, dim)


def fuse_params(params):
    """One-time constant packing (outside the kernel, outside the hot path)."""
    h, d, m = HEADS, DIM_HEAD, NB_FEATURES
    normalizer = d ** -0.25
    eye = jnp.eye(h, dtype=jnp.float32)
    proj_t = params["proj"].T                                     # (d, m)
    return {
        # d**-0.25 folded into the q/k weight columns (free at pack time)
        "wqkv": jnp.concatenate([params["wq"] * normalizer,
                                 params["wk"] * normalizer,
                                 params["wv"]], axis=1),
        "proj_bd": jnp.kron(eye, proj_t),                          # (h*d, h*m)
        "ones_h": jnp.kron(eye, jnp.ones((d, 1), jnp.float32)),    # (h*d, h)
        "wo": params["wo"],
        "bo2d": params["bo"].reshape(1, -1),
    }


# ----------------------------------------------------------------------------
# Deterministic parameter setup
# ----------------------------------------------------------------------------

def gaussian_orthogonal_random_matrix(nb_rows, nb_cols, scaling=0, seed=1234):
    rng = np.random.RandomState(seed)
    nb_full_blocks = nb_rows // nb_cols
    blocks = []
    for _ in range(nb_full_blocks):
        unstructured = rng.randn(nb_cols, nb_cols)
        qm, _ = np.linalg.qr(unstructured)
        blocks.append(qm.T)
    remaining = nb_rows - nb_full_blocks * nb_cols
    if remaining > 0:
        unstructured = rng.randn(nb_cols, nb_cols)
        qm, _ = np.linalg.qr(unstructured)
        blocks.append(qm.T[:remaining])
    final = np.concatenate(blocks, axis=0)
    if scaling == 0:
        multiplier = np.linalg.norm(rng.randn(nb_rows, nb_cols), axis=1)
    else:
        multiplier = math.sqrt(float(nb_cols)) * np.ones(nb_rows)
    return jnp.asarray(np.diag(multiplier) @ final, dtype=jnp.float32)


def make_params(key):
    ks = jax.random.split(key, 5)
    scale = 0.1
    return {
        "wq": scale * jax.random.normal(ks[0], (DIM, INNER), jnp.float32),
        "bq": jnp.zeros((INNER,), jnp.float32),        # qkv biases are zero
        "wk": scale * jax.random.normal(ks[1], (DIM, INNER), jnp.float32),
        "bk": jnp.zeros((INNER,), jnp.float32),
        "wv": scale * jax.random.normal(ks[2], (DIM, INNER), jnp.float32),
        "bv": jnp.zeros((INNER,), jnp.float32),
        "wo": scale * jax.random.normal(ks[3], (INNER, DIM), jnp.float32),
        "bo": scale * jax.random.normal(ks[4], (DIM,), jnp.float32),
        "proj": gaussian_orthogonal_random_matrix(NB_FEATURES, DIM_HEAD),
    }


# ----------------------------------------------------------------------------
# Pure-JAX reference (for a sanity check)
# ----------------------------------------------------------------------------

def reference_forward(x, params):
    b, n, _ = x.shape
    h, d, m = HEADS, DIM_HEAD, NB_FEATURES
    proj = params["proj"]
    q = x @ params["wq"] + params["bq"]
    k = x @ params["wk"] + params["bk"]
    v = x @ params["wv"] + params["bv"]

    def sh(t):
        return t.reshape(b, n, h, d).transpose(0, 2, 1, 3)

    q, k, v = map(sh, (q, k, v))
    normalizer = d ** -0.25
    ratio = m ** -0.5

    def dash(t):
        return jnp.einsum("bhnd,md->bhnm", normalizer * t, proj)

    def diag(t):
        return (jnp.sum(t * t, -1, keepdims=True) / 2.0) * normalizer ** 2

    qd, kd = dash(q), dash(k)
    qf = ratio * (jnp.exp(qd - diag(q) - jnp.max(qd, -1, keepdims=True)) + EPS)
    kf = ratio * (jnp.exp(kd - diag(k) - jnp.max(kd)) + EPS)

    k_cumsum = kf.sum(-2)
    d_inv = 1.0 / jnp.einsum("bhnm,bhm->bhn", qf, k_cumsum)
    context = jnp.einsum("bhnm,bhne->bhme", kf, v)
    out = jnp.einsum("bhme,bhnm,bhn->bhne", context, qf, d_inv)
    out = out.transpose(0, 2, 1, 3).reshape(b, n, h * d)
    return out @ params["wo"] + params["bo"]


# ----------------------------------------------------------------------------

if __name__ == "__main__":
    key = jax.random.PRNGKey(0)
    k_x, k_p = jax.random.split(key)
    x = jax.random.normal(k_x, (BATCH, SEQ, DIM), jnp.float32)
    params = make_params(k_p)
    fused = fuse_params(params)

    out = jax.block_until_ready(performer_self_attention(x, fused))
    ref = jax.block_until_ready(reference_forward(x, params))

    assert out.shape == (BATCH, SEQ, DIM)
    np.testing.assert_allclose(np.asarray(out), np.asarray(ref),
                               rtol=2e-2, atol=2e-2)
    print("KERNEL_OK")
</pallas_src>

<mosaic_0001>
module attributes {stable_mosaic.version = 11 : i64} {
  func.func @fused_performer_kernel(%arg0: memref<16x32xf32, #tpu.memory_space<vmem>>, %arg1: memref<32x96xf32, #tpu.memory_space<vmem>>, %arg2: memref<32x64xf32, #tpu.memory_space<vmem>>, %arg3: memref<32x2xf32, #tpu.memory_space<vmem>>, %arg4: memref<32x32xf32, #tpu.memory_space<vmem>>, %arg5: memref<1x32xf32, #tpu.memory_space<vmem>>, %arg6: memref<16x32xf32, #tpu.memory_space<vmem>>, %arg7: memref<16x32xf32, #tpu.memory_space<vmem>>) attributes {dimension_semantics = [], scalar_prefetch = 0 : i64, scratch_operands = 1 : i64, tpu.core_type = #tpu.core_type<tc>} {
    %c0 = arith.constant 0 : index
    %c0_0 = arith.constant 0 : index
    %0 = vector.load %arg0[%c0, %c0_0] : memref<16x32xf32, #tpu.memory_space<vmem>>, vector<16x32xf32>
    %c0_1 = arith.constant 0 : index
    %c0_2 = arith.constant 0 : index
    %1 = vector.load %arg1[%c0_1, %c0_2] : memref<32x96xf32, #tpu.memory_space<vmem>>, vector<32x96xf32>
    %cst = arith.constant dense<0.000000e+00> : vector<16x96xf32>
    %2 = tpu.matmul %0, %1, %cst {dimension_numbers = #tpu.dot_dimension_numbers<[1], [0], [0], [1], [0, 0, 1, 1], [], []>} : vector<16x32xf32>, vector<32x96xf32>, vector<16x96xf32> -> vector<16x96xf32>
    %3 = vector.extract_strided_slice %2 {offsets = [0, 0], sizes = [16, 32], strides = [1, 1]} : vector<16x96xf32> to vector<16x32xf32>
    %4 = vector.extract_strided_slice %2 {offsets = [0, 32], sizes = [16, 32], strides = [1, 1]} : vector<16x96xf32> to vector<16x32xf32>
    %5 = vector.extract_strided_slice %2 {offsets = [0, 64], sizes = [16, 32], strides = [1, 1]} : vector<16x96xf32> to vector<16x32xf32>
    %6 = tpu.concatenate %3, %4 in 0 : vector<16x32xf32>, vector<16x32xf32> -> vector<32x32xf32>
    %c0_3 = arith.constant 0 : index
    %c0_4 = arith.constant 0 : index
    %7 = vector.load %arg2[%c0_3, %c0_4] : memref<32x64xf32, #tpu.memory_space<vmem>>, vector<32x64xf32>
    %cst_5 = arith.constant dense<0.000000e+00> : vector<32x64xf32>
    %8 = tpu.matmul %6, %7, %cst_5 {dimension_numbers = #tpu.dot_dimension_numbers<[1], [0], [0], [1], [0, 0, 1, 1], [], []>} : vector<32x32xf32>, vector<32x64xf32>, vector<32x64xf32> -> vector<32x64xf32>
    %9 = arith.mulf %6, %6 : vector<32x32xf32>
    %c0_6 = arith.constant 0 : index
    %c0_7 = arith.constant 0 : index
    %10 = vector.load %arg3[%c0_6, %c0_7] : memref<32x2xf32, #tpu.memory_space<vmem>>, vector<32x2xf32>
    %cst_8 = arith.constant dense<0.000000e+00> : vector<32x2xf32>
    %11 = tpu.matmul %9, %10, %cst_8 {dimension_numbers = #tpu.dot_dimension_numbers<[1], [0], [0], [1], [0, 0, 1, 1], [], []>} : vector<32x32xf32>, vector<32x2xf32>, vector<32x2xf32> -> vector<32x2xf32>
    %cst_9 = arith.constant 5.000000e-01 : f32
    %12 = vector.broadcast %cst_9 : f32 to vector<32x2xf32>
    %13 = arith.mulf %12, %11 : vector<32x2xf32>
    %14 = vector.extract_strided_slice %8 {offsets = [0, 0], sizes = [16, 64], strides = [1, 1]} : vector<32x64xf32> to vector<16x64xf32>
    %15 = vector.extract_strided_slice %8 {offsets = [16, 0], sizes = [16, 64], strides = [1, 1]} : vector<32x64xf32> to vector<16x64xf32>
    %16 = vector.extract_strided_slice %13 {offsets = [0, 0], sizes = [16, 2], strides = [1, 1]} : vector<32x2xf32> to vector<16x2xf32>
    %17 = vector.extract_strided_slice %13 {offsets = [16, 0], sizes = [16, 2], strides = [1, 1]} : vector<32x2xf32> to vector<16x2xf32>
    %18 = vector.shape_cast %15 : vector<16x64xf32> to vector<1x16x64xf32>
    %cst_10 = arith.constant dense<0xFF800000> : vector<1xf32>
    %19 = vector.multi_reduction <maximumf>, %18, %cst_10 [1, 2] : vector<1x16x64xf32> to vector<1xf32>
    %20 = vector.shape_cast %19 : vector<1xf32> to vector<1x1x1xf32>
    %21 = vector.extract %20[0, 0, 0] : f32 from vector<1x1x1xf32>
    %22 = vector.broadcast %21 : f32 to vector<1x1xf32>
    %23 = vector.extract_strided_slice %14 {offsets = [0, 0], sizes = [8, 32], strides = [1, 1]} : vector<16x64xf32> to vector<8x32xf32>
    %24 = vector.extract_strided_slice %15 {offsets = [0, 0], sizes = [8, 32], strides = [1, 1]} : vector<16x64xf32> to vector<8x32xf32>
    %25 = vector.extract_strided_slice %16 {offsets = [0, 0], sizes = [8, 1], strides = [1, 1]} : vector<16x2xf32> to vector<8x1xf32>
    %26 = vector.extract_strided_slice %17 {offsets = [0, 0], sizes = [8, 1], strides = [1, 1]} : vector<16x2xf32> to vector<8x1xf32>
    %cst_11 = arith.constant dense<0xFF800000> : vector<8xf32>
    %27 = vector.multi_reduction <maximumf>, %23, %cst_11 [1] : vector<8x32xf32> to vector<8xf32>
    %28 = vector.shape_cast %27 : vector<8xf32> to vector<8x1xf32>
    %29 = vector.broadcast %25 : vector<8x1xf32> to vector<8x32xf32>
    %30 = arith.subf %23, %29 : vector<8x32xf32>
    %31 = vector.broadcast %28 : vector<8x1xf32> to vector<8x32xf32>
    %32 = arith.subf %30, %31 : vector<8x32xf32>
    %33 = math.exp %32 : vector<8x32xf32>
    %cst_12 = arith.constant 9.99999974E-5 : f32
    %34 = vector.broadcast %cst_12 : f32 to vector<8x32xf32>
    %35 = arith.addf %33, %34 : vector<8x32xf32>
    %cst_13 = arith.constant 0.176776692 : f32
    %36 = vector.broadcast %cst_13 : f32 to vector<8x32xf32>
    %37 = arith.mulf %36, %35 : vector<8x32xf32>
    %38 = vector.broadcast %26 : vector<8x1xf32> to vector<8x32xf32>
    %39 = arith.subf %24, %38 : vector<8x32xf32>
    %40 = vector.broadcast %22 : vector<1x1xf32> to vector<8x32xf32>
    %41 = arith.subf %39, %40 : vector<8x32xf32>
    %42 = math.exp %41 : vector<8x32xf32>
    %cst_14 = arith.constant 9.99999974E-5 : f32
    %43 = vector.broadcast %cst_14 : f32 to vector<8x32xf32>
    %44 = arith.addf %42, %43 : vector<8x32xf32>
    %cst_15 = arith.constant 0.176776692 : f32
    %45 = vector.broadcast %cst_15 : f32 to vector<8x32xf32>
    %46 = arith.mulf %45, %44 : vector<8x32xf32>
    %47 = vector.extract_strided_slice %5 {offsets = [0, 0], sizes = [8, 16], strides = [1, 1]} : vector<16x32xf32> to vector<8x16xf32>
    %cst_16 = arith.constant dense<0.000000e+00> : vector<32xf32>
    %48 = vector.multi_reduction <add>, %46, %cst_16 [0] : vector<8x32xf32> to vector<32xf32>
    %49 = vector.shape_cast %48 : vector<32xf32> to vector<1x32xf32>
    %50 = vector.broadcast %49 : vector<1x32xf32> to vector<8x32xf32>
    %51 = arith.mulf %37, %50 : vector<8x32xf32>
    %cst_17 = arith.constant dense<0.000000e+00> : vector<8xf32>
    %52 = vector.multi_reduction <add>, %51, %cst_17 [1] : vector<8x32xf32> to vector<8xf32>
    %53 = vector.shape_cast %52 : vector<8xf32> to vector<8x1xf32>
    %54 = tpu.reciprocal %53 {approx = true} : vector<8x1xf32> -> vector<8x1xf32>
    %cst_18 = arith.constant dense<0.000000e+00> : vector<32x16xf32>
    %55 = tpu.matmul %46, %47, %cst_18 {dimension_numbers = #tpu.dot_dimension_numbers<[0], [0], [1], [1], [0, 1, 1, 1], [], []>} : vector<8x32xf32>, vector<8x16xf32>, vector<32x16xf32> -> vector<32x16xf32>
    %cst_19 = arith.constant dense<0.000000e+00> : vector<8x16xf32>
    %56 = tpu.matmul %37, %55, %cst_19 {dimension_numbers = #tpu.dot_dimension_numbers<[1], [0], [0], [1], [0, 0, 1, 1], [], []>} : vector<8x32xf32>, vector<32x16xf32>, vector<8x16xf32> -> vector<8x16xf32>
    %57 = vector.broadcast %54 : vector<8x1xf32> to vector<8x16xf32>
    %58 = arith.mulf %56, %57 : vector<8x16xf32>
    %c0_20 = arith.constant 0 : index
    %c0_21 = arith.constant 0 : index
    %59 = vector.load %arg7[%c0_20, %c0_21] : memref<16x32xf32, #tpu.memory_space<vmem>>, vector<8x16xf32>
    tpu.vector_store %arg7[%c0_20, %c0_21], %58 {strides = array<i32>} : memref<16x32xf32, #tpu.memory_space<vmem>>, vector<8x16xf32>,
    %60 = vector.extract_strided_slice %14 {offsets = [0, 32], sizes = [8, 32], strides = [1, 1]} : vector<16x64xf32> to vector<8x32xf32>
    %61 = vector.extract_strided_slice %15 {offsets = [0, 32], sizes = [8, 32], strides = [1, 1]} : vector<16x64xf32> to vector<8x32xf32>
    %62 = vector.extract_strided_slice %16 {offsets = [0, 1], sizes = [8, 1], strides = [1, 1]} : vector<16x2xf32> to vector<8x1xf32>
    %63 = vector.extract_strided_slice %17 {offsets = [0, 1], sizes = [8, 1], strides = [1, 1]} : vector<16x2xf32> to vector<8x1xf32>
    %cst_22 = arith.constant dense<0xFF800000> : vector<8xf32>
    %64 = vector.multi_reduction <maximumf>, %60, %cst_22 [1] : vector<8x32xf32> to vector<8xf32>
    %65 = vector.shape_cast %64 : vector<8xf32> to vector<8x1xf32>
    %66 = vector.broadcast %62 : vector<8x1xf32> to vector<8x32xf32>
    %67 = arith.subf %60, %66 : vector<8x32xf32>
    %68 = vector.broadcast %65 : vector<8x1xf32> to vector<8x32xf32>
    %69 = arith.subf %67, %68 : vector<8x32xf32>
    %70 = math.exp %69 : vector<8x32xf32>
    %cst_23 = arith.constant 9.99999974E-5 : f32
    %71 = vector.broadcast %cst_23 : f32 to vector<8x32xf32>
    %72 = arith.addf %70, %71 : vector<8x32xf32>
    %cst_24 = arith.constant 0.176776692 : f32
    %73 = vector.broadcast %cst_24 : f32 to vector<8x32xf32>
    %74 = arith.mulf %73, %72 : vector<8x32xf32>
    %75 = vector.broadcast %63 : vector<8x1xf32> to vector<8x32xf32>
    %76 = arith.subf %61, %75 : vector<8x32xf32>
    %77 = vector.broadcast %22 : vector<1x1xf32> to vector<8x32xf32>
    %78 = arith.subf %76, %77 : vector<8x32xf32>
    %79 = math.exp %78 : vector<8x32xf32>
    %cst_25 = arith.constant 9.99999974E-5 : f32
    %80 = vector.broadcast %cst_25 : f32 to vector<8x32xf32>
    %81 = arith.addf %79, %80 : vector<8x32xf32>
    %cst_26 = arith.constant 0.176776692 : f32
    %82 = vector.broadcast %cst_26 : f32 to vector<8x32xf32>
    %83 = arith.mulf %82, %81 : vector<8x32xf32>
    %84 = vector.extract_strided_slice %5 {offsets = [0, 16], sizes = [8, 16], strides = [1, 1]} : vector<16x32xf32> to vector<8x16xf32>
    %cst_27 = arith.constant dense<0.000000e+00> : vector<32xf32>
    %85 = vector.multi_reduction <add>, %83, %cst_27 [0] : vector<8x32xf32> to vector<32xf32>
    %86 = vector.shape_cast %85 : vector<32xf32> to vector<1x32xf32>
    %87 = vector.broadcast %86 : vector<1x32xf32> to vector<8x32xf32>
    %88 = arith.mulf %74, %87 : vector<8x32xf32>
    %cst_28 = arith.constant dense<0.000000e+00> : vector<8xf32>
    %89 = vector.multi_reduction <add>, %88, %cst_28 [1] : vector<8x32xf32> to vector<8xf32>
    %90 = vector.shape_cast %89 : vector<8xf32> to vector<8x1xf32>
    %91 = tpu.reciprocal %90 {approx = true} : vector<8x1xf32> -> vector<8x1xf32>
    %cst_29 = arith.constant dense<0.000000e+00> : vector<32x16xf32>
    %92 = tpu.matmul %83, %84, %cst_29 {dimension_numbers = #tpu.dot_dimension_numbers<[0], [0], [1], [1], [0, 1, 1, 1], [], []>} : vector<8x32xf32>, vector<8x16xf32>, vector<32x16xf32> -> vector<32x16xf32>
    %cst_30 = arith.constant dense<0.000000e+00> : vector<8x16xf32>
    %93 = tpu.matmul %74, %92, %cst_30 {dimension_numbers = #tpu.dot_dimension_numbers<[1], [0], [0], [1], [0, 0, 1, 1], [], []>} : vector<8x32xf32>, vector<32x16xf32>, vector<8x16xf32> -> vector<8x16xf32>
    %94 = vector.broadcast %91 : vector<8x1xf32> to vector<8x16xf32>
    %95 = arith.mulf %93, %94 : vector<8x16xf32>
    %c0_31 = arith.constant 0 : index
    %c16 = arith.constant 16 : index
    %96 = vector.load %arg7[%c0_31, %c16] : memref<16x32xf32, #tpu.memory_space<vmem>>, vector<8x16xf32>
    tpu.vector_store %arg7[%c0_31, %c16], %95 {strides = array<i32>} : memref<16x32xf32, #tpu.memory_space<vmem>>, vector<8x16xf32>,
    %97 = vector.extract_strided_slice %14 {offsets = [8, 0], sizes = [8, 32], strides = [1, 1]} : vector<16x64xf32> to vector<8x32xf32>
    %98 = vector.extract_strided_slice %15 {offsets = [8, 0], sizes = [8, 32], strides = [1, 1]} : vector<16x64xf32> to vector<8x32xf32>
    %99 = vector.extract_strided_slice %16 {offsets = [8, 0], sizes = [8, 1], strides = [1, 1]} : vector<16x2xf32> to vector<8x1xf32>
    %100 = vector.extract_strided_slice %17 {offsets = [8, 0], sizes = [8, 1], strides = [1, 1]} : vector<16x2xf32> to vector<8x1xf32>
    %cst_32 = arith.constant dense<0xFF800000> : vector<8xf32>
    %101 = vector.multi_reduction <maximumf>, %97, %cst_32 [1] : vector<8x32xf32> to vector<8xf32>
    %102 = vector.shape_cast %101 : vector<8xf32> to vector<8x1xf32>
    %103 = vector.broadcast %99 : vector<8x1xf32> to vector<8x32xf32>
    %104 = arith.subf %97, %103 : vector<8x32xf32>
    %105 = vector.broadcast %102 : vector<8x1xf32> to vector<8x32xf32>
    %106 = arith.subf %104, %105 : vector<8x32xf32>
    %107 = math.exp %106 : vector<8x32xf32>
    %cst_33 = arith.constant 9.99999974E-5 : f32
    %108 = vector.broadcast %cst_33 : f32 to vector<8x32xf32>
    %109 = arith.addf %107, %108 : vector<8x32xf32>
    %cst_34 = arith.constant 0.176776692 : f32
    %110 = vector.broadcast %cst_34 : f32 to vector<8x32xf32>
    %111 = arith.mulf %110, %109 : vector<8x32xf32>
    %112 = vector.broadcast %100 : vector<8x1xf32> to vector<8x32xf32>
    %113 = arith.subf %98, %112 : vector<8x32xf32>
    %114 = vector.broadcast %22 : vector<1x1xf32> to vector<8x32xf32>
    %115 = arith.subf %113, %114 : vector<8x32xf32>
    %116 = math.exp %115 : vector<8x32xf32>
    %cst_35 = arith.constant 9.99999974E-5 : f32
    %117 = vector.broadcast %cst_35 : f32 to vector<8x32xf32>
    %118 = arith.addf %116, %117 : vector<8x32xf32>
    %cst_36 = arith.constant 0.176776692 : f32
    %119 = vector.broadcast %cst_36 : f32 to vector<8x32xf32>
    %120 = arith.mulf %119, %118 : vector<8x32xf32>
    %121 = vector.extract_strided_slice %5 {offsets = [8, 0], sizes = [8, 16], strides = [1, 1]} : vector<16x32xf32> to vector<8x16xf32>
    %cst_37 = arith.constant dense<0.000000e+00> : vector<32xf32>
    %122 = vector.multi_reduction <add>, %120, %cst_37 [0] : vector<8x32xf32> to vector<32xf32>
    %123 = vector.shape_cast %122 : vector<32xf32> to vector<1x32xf32>
    %124 = vector.broadcast %123 : vector<1x32xf32> to vector<8x32xf32>
    %125 = arith.mulf %111, %124 : vector<8x32xf32>
    %cst_38 = arith.constant dense<0.000000e+00> : vector<8xf32>
    %126 = vector.multi_reduction <add>, %125, %cst_38 [1] : vector<8x32xf32> to vector<8xf32>
    %127 = vector.shape_cast %126 : vector<8xf32> to vector<8x1xf32>
    %128 = tpu.reciprocal %127 {approx = true} : vector<8x1xf32> -> vector<8x1xf32>
    %cst_39 = arith.constant dense<0.000000e+00> : vector<32x16xf32>
    %129 = tpu.matmul %120, %121, %cst_39 {dimension_numbers = #tpu.dot_dimension_numbers<[0], [0], [1], [1], [0, 1, 1, 1], [], []>} : vector<8x32xf32>, vector<8x16xf32>, vector<32x16xf32> -> vector<32x16xf32>
    %cst_40 = arith.constant dense<0.000000e+00> : vector<8x16xf32>
    %130 = tpu.matmul %111, %129, %cst_40 {dimension_numbers = #tpu.dot_dimension_numbers<[1], [0], [0], [1], [0, 0, 1, 1], [], []>} : vector<8x32xf32>, vector<32x16xf32>, vector<8x16xf32> -> vector<8x16xf32>
    %131 = vector.broadcast %128 : vector<8x1xf32> to vector<8x16xf32>
    %132 = arith.mulf %130, %131 : vector<8x16xf32>
    %c8 = arith.constant 8 : index
    %c0_41 = arith.constant 0 : index
    %133 = vector.load %arg7[%c8, %c0_41] : memref<16x32xf32, #tpu.memory_space<vmem>>, vector<8x16xf32>
    tpu.vector_store %arg7[%c8, %c0_41], %132 {strides = array<i32>} : memref<16x32xf32, #tpu.memory_space<vmem>>, vector<8x16xf32>,
    %134 = vector.extract_strided_slice %14 {offsets = [8, 32], sizes = [8, 32], strides = [1, 1]} : vector<16x64xf32> to vector<8x32xf32>
    %135 = vector.extract_strided_slice %15 {offsets = [8, 32], sizes = [8, 32], strides = [1, 1]} : vector<16x64xf32> to vector<8x32xf32>
    %136 = vector.extract_strided_slice %16 {offsets = [8, 1], sizes = [8, 1], strides = [1, 1]} : vector<16x2xf32> to vector<8x1xf32>
    %137 = vector.extract_strided_slice %17 {offsets = [8, 1], sizes = [8, 1], strides = [1, 1]} : vector<16x2xf32> to vector<8x1xf32>
    %cst_42 = arith.constant dense<0xFF800000> : vector<8xf32>
    %138 = vector.multi_reduction <maximumf>, %134, %cst_42 [1] : vector<8x32xf32> to vector<8xf32>
    %139 = vector.shape_cast %138 : vector<8xf32> to vector<8x1xf32>
    %140 = vector.broadcast %136 : vector<8x1xf32> to vector<8x32xf32>
    %141 = arith.subf %134, %140 : vector<8x32xf32>
    %142 = vector.broadcast %139 : vector<8x1xf32> to vector<8x32xf32>
    %143 = arith.subf %141, %142 : vector<8x32xf32>
    %144 = math.exp %143 : vector<8x32xf32>
    %cst_43 = arith.constant 9.99999974E-5 : f32
    %145 = vector.broadcast %cst_43 : f32 to vector<8x32xf32>
    %146 = arith.addf %144, %145 : vector<8x32xf32>
    %cst_44 = arith.constant 0.176776692 : f32
    %147 = vector.broadcast %cst_44 : f32 to vector<8x32xf32>
    %148 = arith.mulf %147, %146 : vector<8x32xf32>
    %149 = vector.broadcast %137 : vector<8x1xf32> to vector<8x32xf32>
    %150 = arith.subf %135, %149 : vector<8x32xf32>
    %151 = vector.broadcast %22 : vector<1x1xf32> to vector<8x32xf32>
    %152 = arith.subf %150, %151 : vector<8x32xf32>
    %153 = math.exp %152 : vector<8x32xf32>
    %cst_45 = arith.constant 9.99999974E-5 : f32
    %154 = vector.broadcast %cst_45 : f32 to vector<8x32xf32>
    %155 = arith.addf %153, %154 : vector<8x32xf32>
    %cst_46 = arith.constant 0.176776692 : f32
    %156 = vector.broadcast %cst_46 : f32 to vector<8x32xf32>
    %157 = arith.mulf %156, %155 : vector<8x32xf32>
    %158 = vector.extract_strided_slice %5 {offsets = [8, 16], sizes = [8, 16], strides = [1, 1]} : vector<16x32xf32> to vector<8x16xf32>
    %cst_47 = arith.constant dense<0.000000e+00> : vector<32xf32>
    %159 = vector.multi_reduction <add>, %157, %cst_47 [0] : vector<8x32xf32> to vector<32xf32>
    %160 = vector.shape_cast %159 : vector<32xf32> to vector<1x32xf32>
    %161 = vector.broadcast %160 : vector<1x32xf32> to vector<8x32xf32>
    %162 = arith.mulf %148, %161 : vector<8x32xf32>
    %cst_48 = arith.constant dense<0.000000e+00> : vector<8xf32>
    %163 = vector.multi_reduction <add>, %162, %cst_48 [1] : vector<8x32xf32> to vector<8xf32>
    %164 = vector.shape_cast %163 : vector<8xf32> to vector<8x1xf32>
    %165 = tpu.reciprocal %164 {approx = true} : vector<8x1xf32> -> vector<8x1xf32>
    %cst_49 = arith.constant dense<0.000000e+00> : vector<32x16xf32>
    %166 = tpu.matmul %157, %158, %cst_49 {dimension_numbers = #tpu.dot_dimension_numbers<[0], [0], [1], [1], [0, 1, 1, 1], [], []>} : vector<8x32xf32>, vector<8x16xf32>, vector<32x16xf32> -> vector<32x16xf32>
    %cst_50 = arith.constant dense<0.000000e+00> : vector<8x16xf32>
    %167 = tpu.matmul %148, %166, %cst_50 {dimension_numbers = #tpu.dot_dimension_numbers<[1], [0], [0], [1], [0, 0, 1, 1], [], []>} : vector<8x32xf32>, vector<32x16xf32>, vector<8x16xf32> -> vector<8x16xf32>
    %168 = vector.broadcast %165 : vector<8x1xf32> to vector<8x16xf32>
    %169 = arith.mulf %167, %168 : vector<8x16xf32>
    %c8_51 = arith.constant 8 : index
    %c16_52 = arith.constant 16 : index
    %170 = vector.load %arg7[%c8_51, %c16_52] : memref<16x32xf32, #tpu.memory_space<vmem>>, vector<8x16xf32>
    tpu.vector_store %arg7[%c8_51, %c16_52], %169 {strides = array<i32>} : memref<16x32xf32, #tpu.memory_space<vmem>>, vector<8x16xf32>,
    %c0_53 = arith.constant 0 : index
    %c0_54 = arith.constant 0 : index
    %171 = vector.load %arg7[%c0_53, %c0_54] : memref<16x32xf32, #tpu.memory_space<vmem>>, vector<16x32xf32>
    %c0_55 = arith.constant 0 : index
    %c0_56 = arith.constant 0 : index
    %172 = vector.load %arg4[%c0_55, %c0_56] : memref<32x32xf32, #tpu.memory_space<vmem>>, vector<32x32xf32>
    %cst_57 = arith.constant dense<0.000000e+00> : vector<16x32xf32>
    %173 = tpu.matmul %171, %172, %cst_57 {dimension_numbers = #tpu.dot_dimension_numbers<[1], [0], [0], [1], [0, 0, 1, 1], [], []>} : vector<16x32xf32>, vector<32x32xf32>, vector<16x32xf32> -> vector<16x32xf32>
    %c0_58 = arith.constant 0 : index
    %c0_59 = arith.constant 0 : index
    %174 = vector.load %arg5[%c0_58, %c0_59] : memref<1x32xf32, #tpu.memory_space<vmem>>, vector<1x32xf32>
    %175 = vector.broadcast %174 : vector<1x32xf32> to vector<16x32xf32>
    %176 = arith.addf %173, %175 : vector<16x32xf32>
    %c0_60 = arith.constant 0 : index
    %c0_61 = arith.constant 0 : index
    %177 = vector.load %arg6[%c0_60, %c0_61] : memref<16x32xf32, #tpu.memory_space<vmem>>, vector<16x32xf32>
    tpu.vector_store %arg6[%c0_60, %c0_61], %176 {strides = array<i32>} : memref<16x32xf32, #tpu.memory_space<vmem>>, vector<16x32xf32>,
    return
  }
}

</mosaic_0001>

<llo_original>
// kernel: performer_self_attention.1
$region0: #{performer_self_attention.1}
  #allocation0 [shape = 'u32[]', space=smem, size = 0x4, offset = 0x4, fixed_abs, tag = 'smem constant byte address 0x4 - core index']
  #allocation1 [shape = 'u32[72,128]{1,0:T(1,128)}', space=vmem, size = 0x9000, scoped, tag = 'internal scratch']
  #allocation2 [shape = 'f32[16,32]{1,0:T(8,128)}', space=vmem, size = 0x2000, scoped, tag = 'scratch operand']
  %s0 = inlined_call_operand.hbm [shape: f32[16,32], index: 0, kind: input, shape index: {}]
  %s1 = inlined_call_operand.vmem [shape: f32[32,96], index: 1, kind: input, shape index: {}]
  %s2 = inlined_call_operand.hbm [shape: f32[32,64], index: 2, kind: input, shape index: {}]
  %s3 = inlined_call_operand.vmem [shape: f32[32,2], index: 3, kind: input, shape index: {}]
  %s4 = inlined_call_operand.hbm [shape: f32[32,32], index: 4, kind: input, shape index: {}]
  %s5 = inlined_call_operand.vmem [shape: f32[1,32], index: 5, kind: input, shape index: {}]
  %s6 = inlined_call_operand.hbm [shape: f32[16,32], index: 6, kind: output, shape index: {}]
  %s7 = sld [smem:[#allocation0]]
  $region46: #{performer_self_attention.1} parent=0
    _
  %s9 = ssub.s32 1, %s7
  %s10 = scalar_select 0, %s9, %s7
  $region1: #{performer_self_attention.1} parent=0
    #allocation3 [shape = 'u8[8192]{0}', space=vmem, size = 0x2000, scoped, tag = 'input window, operand 0, single buffered']
    #allocation4 [shape = 's32[1]{0}', space=sflag, size = 0x4, scoped, tag = 'scoped memory for performer_self_attention.1']
    #allocation5 [shape = 's32[1]{0}', space=sflag, size = 0x4, scoped, tag = 'scoped memory for performer_self_attention.1']
    #allocation6 [shape = 'u8[16384]{0}', space=vmem, size = 0x4000, scoped, tag = 'input window, operand 2, single buffered']
    #allocation7 [shape = 's32[1]{0}', space=sflag, size = 0x4, scoped, tag = 'scoped memory for performer_self_attention.1']
    #allocation8 [shape = 'u8[16384]{0}', space=vmem, size = 0x4000, scoped, tag = 'input window, operand 4, single buffered']
    #allocation9 [shape = 'u8[8192]{0}', space=vmem, size = 0x2000, scoped, tag = 'output window, operand 0, single buffered']
    %11 = vsyncpa [#allocation4], 0
    %12 = vsyncpa [#allocation7], 0
    %13 = vsyncpa [#allocation5], 0
    // Predicated region
    $region2: #{performer_self_attention.1} parent=1 // pred_check
      _
    $region3: #{performer_self_attention.1} parent=1 // pred_check_branch
      %15 = sbr.rel (0) target = $region5
    $region4: #{performer_self_attention.1} parent=1 // pred_region
      %17 = vsyncadd [#allocation4], 0
      %s18 = sshll.u32 %s0, 4
      %s19 = int_to_ptr.hbm [resolvable:$true] %s18
      %s20 = sshll.u32 [#allocation3], 4
      %s21 = int_to_ptr.vmem [resolvable:$true] %s20
      %26 = dma.hbm_to_vmem [thread:$0]  %s19, 256, %s21, [#allocation4], 128, 128, 8
    $region5: #{performer_self_attention.1} parent=1 // pred_fallthru
      _
    // Predicated region
    $region6: #{performer_self_attention.1} parent=1 // pred_check
      _
    $region7: #{performer_self_attention.1} parent=1 // pred_check_branch
      %28 = sbr.rel (0) target = $region9
    $region8: #{performer_self_attention.1} parent=1 // pred_region
      _
    $region9: #{performer_self_attention.1} parent=1 // pred_fallthru
      _
    // Predicated region
    $region10: #{performer_self_attention.1} parent=1 // pred_check
      _
    $region11: #{performer_self_attention.1} parent=1 // pred_check_branch
      %30 = sbr.rel (0) target = $region13
    $region12: #{performer_self_attention.1} parent=1 // pred_region
      %32 = vsyncadd [#allocation7], 0
      %s33 = sshll.u32 %s2, 4
      %s34 = int_to_ptr.hbm [resolvable:$true] %s33
      %s35 = sshll.u32 [#allocation6], 4
      %s36 = int_to_ptr.vmem [resolvable:$true] %s35
      %41 = dma.hbm_to_vmem [thread:$0]  %s34, 512, %s36, [#allocation7], 128, 128, 8
    $region13: #{performer_self_attention.1} parent=1 // pred_fallthru
      _
    // Predicated region
    $region14: #{performer_self_attention.1} parent=1 // pred_check
      _
    $region15: #{performer_self_attention.1} parent=1 // pred_check_branch
      %43 = sbr.rel (0) target = $region17
    $region16: #{performer_self_attention.1} parent=1 // pred_region
      _
    $region17: #{performer_self_attention.1} parent=1 // pred_fallthru
      _
    // Predicated region
    $region18: #{performer_self_attention.1} parent=1 // pred_check
      _
    $region19: #{performer_self_attention.1} parent=1 // pred_check_branch
      %45 = sbr.rel (0) target = $region21
    $region20: #{performer_self_attention.1} parent=1 // pred_region
      %47 = vsyncadd [#allocation7], 0
      %s48 = sshll.u32 %s4, 4
      %s49 = int_to_ptr.hbm [resolvable:$true] %s48
      %s50 = sshll.u32 [#allocation8], 4
      %s51 = int_to_ptr.vmem [resolvable:$true] %s50
      %56 = dma.hbm_to_vmem [thread:$0]  %s49, 512, %s51, [#allocation7], 128, 128, 8
    $region21: #{performer_self_attention.1} parent=1 // pred_fallthru
      _
    // Predicated region
    $region22: #{performer_self_attention.1} parent=1 // pred_check
      _
    $region23: #{performer_self_attention.1} parent=1 // pred_check_branch
      %58 = sbr.rel (0) target = $region25
    $region24: #{performer_self_attention.1} parent=1 // pred_region
      _
    $region25: #{performer_self_attention.1} parent=1 // pred_fallthru
      _
    // Predicated region
    $region26: #{performer_self_attention.1} parent=1 // pred_check
      _
    $region27: #{performer_self_attention.1} parent=1 // pred_check_branch
      %60 = sbr.rel (0) target = $region29
    $region28: #{performer_self_attention.1} parent=1 // pred_region
      %62 = dma.done [#allocation4], 256
    $region29: #{performer_self_attention.1} parent=1 // pred_fallthru
      _
    // Predicated region
    $region30: #{performer_self_attention.1} parent=1 // pred_check
      _
    $region31: #{performer_self_attention.1} parent=1 // pred_check_branch
      %64 = sbr.rel (0) target = $region33
    $region32: #{performer_self_attention.1} parent=1 // pred_region
      %66 = dma.done [#allocation7], 512
    $region33: #{performer_self_attention.1} parent=1 // pred_fallthru
      _
    // Predicated region
    $region34: #{performer_self_attention.1} parent=1 // pred_check
      _
    $region35: #{performer_self_attention.1} parent=1 // pred_check_branch
      %68 = sbr.rel (0) target = $region37
    $region36: #{performer_self_attention.1} parent=1 // pred_region
      %70 = dma.done [#allocation7], 512
    $region37: #{performer_self_attention.1} parent=1 // pred_fallthru
      _
    %v71 = vld [vmem:[#allocation3] sm:$0xff]
    %v72 = vld [vmem:[#allocation3 + $0x8] sm:$0xff]
    %v73 = vld [vmem:[%s1] sm:$0xff]
    %v74 = vld [vmem:[%s1 + $0x8] sm:$0xff]
    %v75 = vld [vmem:[%s1 + $0x10] sm:$0xff]
    %v76 = vld [vmem:[%s1 + $0x18] sm:$0xff]
    %vm77 = vcmask 261120
    %v79 = vsel %vm77, %v71, 0
    %v82 = vsel %vm77, %v72, 0
    %84 = vmatpush.msra.mxu0 0.0
    %85 = vmatpush.msra.mxu0 0.0
    %86 = vmatpush.msra.mxu0 0.0
    %87 = vmatpush.msra.mxu0 0.0
    %88 = vmatpush.msra.mxu0 0.0
    %89 = vmatpush.msra.mxu0 0.0
    %90 = vmatpush.msra.mxu0 0.0
    %91 = vmatpush.msra.mxu0 0.0
    %92 = vmatpush.msra.mxu0 0.0
    %93 = vmatpush.msra.mxu0 0.0
    %94 = vmatpush.msra.mxu0 0.0
    %95 = vmatpush.msra.mxu0 0.0
    %96 = vmatpush.msra.mxu0 %v76
    %97 = vmatpush.msra.mxu0 %v75
    %98 = vmatpush.msra.mxu0 %v74
    %99 = vmatpush.msra.mxu0 %v73
    %100 = vmatmul.f32.gmra.mxu0 %v79
    %v101 = vpop.f32.mrf.mxu0
    %v102 = vadd.f32 0.0, %v101
    %103 = vmatmul.f32.gmra.mxu0 %v82
    %v104 = vpop.f32.mrf.mxu0
    %v105 = vadd.f32 0.0, %v104
    %106 = vdwg.mxu0
    %109 = vrot.lane.b32.xlu0 %v102, 96
    %v110 = vpop.permute.xlu0 %109
    %111 = vrot.lane.b32.xlu0 %v105, 96
    %v112 = vpop.permute.xlu0 %111
    %v115 = vld [vmem:[#allocation6] sm:$0xff]
    %v116 = vld [vmem:[#allocation6 + $0x8] sm:$0xff]
    %v117 = vld [vmem:[#allocation6 + $0x10] sm:$0xff]
    %v118 = vld [vmem:[#allocation6 + $0x18] sm:$0xff]
    %v119 = vsel %vm77, %v102, 0
    %v121 = vsel %vm77, %v105, 0
    %v123 = vsel %vm77, %v110, 0
    %v125 = vsel %vm77, %v112, 0
    %127 = vmatpush.msra.mxu0 0.0
    %128 = vmatpush.msra.mxu0 0.0
    %129 = vmatpush.msra.mxu0 0.0
    %130 = vmatpush.msra.mxu0 0.0
    %131 = vmatpush.msra.mxu0 0.0
    %132 = vmatpush.msra.mxu0 0.0
    %133 = vmatpush.msra.mxu0 0.0
    %134 = vmatpush.msra.mxu0 0.0
    %135 = vmatpush.msra.mxu0 0.0
    %136 = vmatpush.msra.mxu0 0.0
    %137 = vmatpush.msra.mxu0 0.0
    %138 = vmatpush.msra.mxu0 0.0
    %139 = vmatpush.msra.mxu0 %v118
    %140 = vmatpush.msra.mxu0 %v117
    %141 = vmatpush.msra.mxu0 %v116
    %142 = vmatpush.msra.mxu0 %v115
    %143 = vmatmul.f32.gmra.mxu0 %v119
    %v144 = vpop.f32.mrf.mxu0
    %v145 = vadd.f32 0.0, %v144
    %146 = vmatmul.f32.gmra.mxu0 %v121
    %v147 = vpop.f32.mrf.mxu0
    %v148 = vadd.f32 0.0, %v147
    %149 = vmatmul.f32.gmra.mxu0 %v123
    %v150 = vpop.f32.mrf.mxu0
    %v151 = vadd.f32 0.0, %v150
    %152 = vmatmul.f32.gmra.mxu0 %v125
    %v153 = vpop.f32.mrf.mxu0
    %v154 = vadd.f32 0.0, %v153
    %155 = vdwg.mxu0
    %v156 = vmul.f32 %v102, %v102
    %v157 = vmul.f32 %v105, %v105
    %v158 = vmul.f32 %v110, %v110
    %v159 = vmul.f32 %v112, %v112
    %v160 = vld [vmem:[%s3] sm:$0xff]
    %v161 = vld [vmem:[%s3 + $0x8] sm:$0xff]
    %v162 = vld [vmem:[%s3 + $0x10] sm:$0xff]
    %v163 = vld [vmem:[%s3 + $0x18] sm:$0xff]
    %v165 = vsel %vm77, %v156, 0
    %v168 = vsel %vm77, %v157, 0
    %v171 = vsel %vm77, %v158, 0
    %v174 = vsel %vm77, %v159, 0
    %176 = vmatpush.msra.mxu0 0.0
    %177 = vmatpush.msra.mxu0 0.0
    %178 = vmatpush.msra.mxu0 0.0
    %179 = vmatpush.msra.mxu0 0.0
    %180 = vmatpush.msra.mxu0 0.0
    %181 = vmatpush.msra.mxu0 0.0
    %182 = vmatpush.msra.mxu0 0.0
    %183 = vmatpush.msra.mxu0 0.0
    %184 = vmatpush.msra.mxu0 0.0
    %185 = vmatpush.msra.mxu0 0.0
    %186 = vmatpush.msra.mxu0 0.0
    %187 = vmatpush.msra.mxu0 0.0
    %188 = vmatpush.msra.mxu0 %v163
    %189 = vmatpush.msra.mxu0 %v162
    %190 = vmatpush.msra.mxu0 %v161
    %191 = vmatpush.msra.mxu0 %v160
    %192 = vmatmul.f32.gmra.mxu0 %v165
    %v193 = vpop.f32.mrf.mxu0
    %v194 = vadd.f32 0.0, %v193
    %195 = vmatmul.f32.gmra.mxu0 %v168
    %v196 = vpop.f32.mrf.mxu0
    %v197 = vadd.f32 0.0, %v196
    %198 = vmatmul.f32.gmra.mxu0 %v171
    %v199 = vpop.f32.mrf.mxu0
    %v200 = vadd.f32 0.0, %v199
    %201 = vmatmul.f32.gmra.mxu0 %v174
    %v202 = vpop.f32.mrf.mxu0
    %v203 = vadd.f32 0.0, %v202
    %204 = vdwg.mxu0
    %v205 = vmul.f32 %v194, 0.5
    %v206 = vmul.f32 %v197, 0.5
    %v207 = vmul.f32 %v200, 0.5
    %v208 = vmul.f32 %v203, 0.5
    %vm209 = vcmask 523264
    %v210 = vsel %vm209, %v151, -inf
    %v211 = vsel %vm209, %v154, -inf
    %v212 = vmax.f32 %v210, %v211
    %213 = vmax.xlane.f32.xlu0 %v212
    %v214 = vpop.xlane.xlu0 %213
    %v215 = vrot.slane %v214, 4
    %v216 = vmax.f32 %v214, %v215
    %v217 = vrot.slane %v216, 2
    %v218 = vmax.f32 %v216, %v217
    %v219 = vrot.slane %v218, 1
    %v220 = vmax.f32 %v218, %v219
    %s221 = vtos %v220
    %v222 = vsel %vm77, %v145, -inf
    %223 = vmax.xlane.f32.xlu0 %v222
    %v224 = vpop.xlane.xlu0 %223
    %226 = vset.pattern.permute.xlu0 0
    %227 = vperm.xlu0 %226, %v205
    %v228 = vpop.permute.xlu0 %227
    %v230 = vsub.f32 %v145, %v228
    %v231 = vsub.f32 %v230, %v224
    %v232 = vmul.f32 %v231, 1.442695
    %v233 = vpow.pop %v232
    %v234 = vadd.f32 %v233, 0.0001
    %v235 = vmul.f32 %v234, 0.17677669
    %237 = vset.pattern.permute.xlu0 0
    %238 = vperm.xlu0 %237, %v207
    %v239 = vpop.permute.xlu0 %238
    %v241 = vsub.f32 %v151, %v239
    %v242 = vstv %s221
    %v243 = vsub.f32 %v241, %v242
    %v244 = vmul.f32 %v243, 1.442695
    %v245 = vpow.pop %v244
    %v246 = vadd.f32 %v245, 0.0001
    %v247 = vmul.f32 %v246, 0.17677669
    %v248 = vsel %vm77, %v247, 0.0
    %v249 = vrot.slane %v248, 4
    %v250 = vadd.f32 %v248, %v249
    %v251 = vrot.slane %v250, 2
    %v252 = vadd.f32 %v250, %v251
    %v253 = vrot.slane %v252, 1
    %v254 = vadd.f32 %v252, %v253
    %v255 = vmul.f32 %v235, %v254
    %v256 = vsel %vm77, %v255, 0.0
    %257 = vadd.xlane.f32.xlu0 %v256
    %v258 = vpop.xlane.xlu0 %257
    %v259 = vrcp.pop %v258
    %260 = vxpose.xlu0.b32.start [1/16] %v247, 128
    %261 = vxpose.xlu0.b32.cont [2/16] 0.0, 128
    %262 = vxpose.xlu0.b32.cont [3/16] 0.0, 128
    %263 = vxpose.xlu0.b32.cont [4/16] 0.0, 128
    %264 = vxpose.xlu0.b32.cont [5/16] 0.0, 128
    %265 = vxpose.xlu0.b32.cont [6/16] 0.0, 128
    %266 = vxpose.xlu0.b32.cont [7/16] 0.0, 128
    %267 = vxpose.xlu0.b32.cont [8/16] 0.0, 128
    %268 = vxpose.xlu0.b32.cont [9/16] 0.0, 128
    %269 = vxpose.xlu0.b32.cont [10/16] 0.0, 128
    %270 = vxpose.xlu0.b32.cont [11/16] 0.0, 128
    %271 = vxpose.xlu0.b32.cont [12/16] 0.0, 128
    %272 = vxpose.xlu0.b32.cont [13/16] 0.0, 128
    %273 = vxpose.xlu0.b32.cont [14/16] 0.0, 128
    %274 = vxpose.xlu0.b32.cont [15/16] 0.0, 128
    %275 = vxpose.xlu0.b32.end [16/16] 0.0, 128
    %v276 = vpop.trf.xlu0
    %v277 = vpop.trf.xlu0
    %v278 = vpop.trf.xlu0
    %v279 = vpop.trf.xlu0
    %v280 = vpop.trf.xlu0
    %v281 = vpop.trf.xlu0
    %v282 = vpop.trf.xlu0
    %v283 = vpop.trf.xlu0
    %v284 = vpop.trf.xlu0
    %v285 = vpop.trf.xlu0
    %v286 = vpop.trf.xlu0
    %v287 = vpop.trf.xlu0
    %v288 = vpop.trf.xlu0
    %v289 = vpop.trf.xlu0
    %v290 = vpop.trf.xlu0
    %v291 = vpop.trf.xlu0
    %292 = vrot.lane.b32.xlu0 %v102, 64
    %v293 = vpop.permute.xlu0 %292
    %vm295 = vcmask 64512
    %v297 = vsel %vm295, %v276, 0
    %v300 = vsel %vm295, %v277, 0
    %v303 = vsel %vm295, %v278, 0
    %v306 = vsel %vm295, %v279, 0
    %308 = vmatpush.msra.mxu0 0.0
    %309 = vmatpush.msra.mxu0 0.0
    %310 = vmatpush.msra.mxu0 0.0
    %311 = vmatpush.msra.mxu0 0.0
    %312 = vmatpush.msra.mxu0 0.0
    %313 = vmatpush.msra.mxu0 0.0
    %314 = vmatpush.msra.mxu0 0.0
    %315 = vmatpush.msra.mxu0 0.0
    %316 = vmatpush.msra.mxu0 0.0
    %317 = vmatpush.msra.mxu0 0.0
    %318 = vmatpush.msra.mxu0 0.0
    %319 = vmatpush.msra.mxu0 0.0
    %320 = vmatpush.msra.mxu0 0.0
    %321 = vmatpush.msra.mxu0 0.0
    %322 = vmatpush.msra.mxu0 0.0
    %323 = vmatpush.msra.mxu0 %v293
    %324 = vmatmul.f32.gmra.mxu0 %v297
    %v325 = vpop.f32.mrf.mxu0
    %v326 = vadd.f32 0.0, %v325
    %327 = vmatmul.f32.gmra.mxu0 %v300
    %v328 = vpop.f32.mrf.mxu0
    %v329 = vadd.f32 0.0, %v328
    %330 = vmatmul.f32.gmra.mxu0 %v303
    %v331 = vpop.f32.mrf.mxu0
    %v332 = vadd.f32 0.0, %v331
    %333 = vmatmul.f32.gmra.mxu0 %v306
    %v334 = vpop.f32.mrf.mxu0
    %v335 = vadd.f32 0.0, %v334
    %336 = vdwg.mxu0
    %v338 = vsel %vm77, %v235, 0
    %340 = vmatpush.msra.mxu0 0.0
    %341 = vmatpush.msra.mxu0 0.0
    %342 = vmatpush.msra.mxu0 0.0
    %343 = vmatpush.msra.mxu0 0.0
    %344 = vmatpush.msra.mxu0 0.0
    %345 = vmatpush.msra.mxu0 0.0
    %346 = vmatpush.msra.mxu0 0.0
    %347 = vmatpush.msra.mxu0 0.0
    %348 = vmatpush.msra.mxu0 0.0
    %349 = vmatpush.msra.mxu0 0.0
    %350 = vmatpush.msra.mxu0 0.0
    %351 = vmatpush.msra.mxu0 0.0
    %352 = vmatpush.msra.mxu0 %v335
    %353 = vmatpush.msra.mxu0 %v332
    %354 = vmatpush.msra.mxu0 %v329
    %355 = vmatpush.msra.mxu0 %v326
    %356 = vmatmul.f32.gmra.mxu0 %v338
    %v357 = vpop.f32.mrf.mxu0
    %v358 = vadd.f32 0.0, %v357
    %359 = vdwg.mxu0
    %v360 = vmul.f32 %v358, %v259
    %vm361 = vcmask 130048
    %362 = vst.msk [vmem:[#allocation2] sm:$0xff] %vm361, %v360
    %vm363 = vcmask 523520
    %v364 = vsel %vm363, %v145, -inf
    %365 = vmax.xlane.f32.xlu0 %v364
    %v366 = vpop.xlane.xlu0 %365
    %367 = vset.pattern.permute.xlu0 1
    %368 = vperm.xlu0 %367, %v205
    %v369 = vpop.permute.xlu0 %368
    %v371 = vsub.f32 %v145, %v369
    %v372 = vsub.f32 %v371, %v366
    %v373 = vmul.f32 %v372, 1.442695
    %v374 = vpow.pop %v373
    %v375 = vadd.f32 %v374, 0.0001
    %v376 = vmul.f32 %v375, 0.17677669
    %377 = vset.pattern.permute.xlu0 1
    %378 = vperm.xlu0 %377, %v207
    %v379 = vpop.permute.xlu0 %378
    %v381 = vsub.f32 %v151, %v379
    %v382 = vsub.f32 %v381, %v242
    %v383 = vmul.f32 %v382, 1.442695
    %v384 = vpow.pop %v383
    %v385 = vadd.f32 %v384, 0.0001
    %v386 = vmul.f32 %v385, 0.17677669
    %v387 = vsel %vm363, %v386, 0.0
    %v388 = vrot.slane %v387, 4
    %v389 = vadd.f32 %v387, %v388
    %v390 = vrot.slane %v389, 2
    %v391 = vadd.f32 %v389, %v390
    %v392 = vrot.slane %v391, 1
    %v393 = vadd.f32 %v391, %v392
    %v394 = vmul.f32 %v376, %v393
    %396 = vrot.lane.b32.xlu0 %v394, 96
    %v397 = vpop.permute.xlu0 %396
    %v399 = vsel %vm77, %v397, 0.0
    %400 = vadd.xlane.f32.xlu0 %v399
    %v401 = vpop.xlane.xlu0 %400
    %v402 = vrcp.pop %v401
    %404 = vrot.lane.b32.xlu0 %v386, 96
    %v405 = vpop.permute.xlu0 %404
    %407 = vxpose.xlu0.b32.start [1/16] %v405, 128
    %408 = vxpose.xlu0.b32.cont [2/16] 0.0, 128
    %409 = vxpose.xlu0.b32.cont [3/16] 0.0, 128
    %410 = vxpose.xlu0.b32.cont [4/16] 0.0, 128
    %411 = vxpose.xlu0.b32.cont [5/16] 0.0, 128
    %412 = vxpose.xlu0.b32.cont [6/16] 0.0, 128
    %413 = vxpose.xlu0.b32.cont [7/16] 0.0, 128
    %414 = vxpose.xlu0.b32.cont [8/16] 0.0, 128
    %415 = vxpose.xlu0.b32.cont [9/16] 0.0, 128
    %416 = vxpose.xlu0.b32.cont [10/16] 0.0, 128
    %417 = vxpose.xlu0.b32.cont [11/16] 0.0, 128
    %418 = vxpose.xlu0.b32.cont [12/16] 0.0, 128
    %419 = vxpose.xlu0.b32.cont [13/16] 0.0, 128
    %420 = vxpose.xlu0.b32.cont [14/16] 0.0, 128
    %421 = vxpose.xlu0.b32.cont [15/16] 0.0, 128
    %422 = vxpose.xlu0.b32.end [16/16] 0.0, 128
    %v423 = vpop.trf.xlu0
    %v424 = vpop.trf.xlu0
    %v425 = vpop.trf.xlu0
    %v426 = vpop.trf.xlu0
    %v427 = vpop.trf.xlu0
    %v428 = vpop.trf.xlu0
    %v429 = vpop.trf.xlu0
    %v430 = vpop.trf.xlu0
    %v431 = vpop.trf.xlu0
    %v432 = vpop.trf.xlu0
    %v433 = vpop.trf.xlu0
    %v434 = vpop.trf.xlu0
    %v435 = vpop.trf.xlu0
    %v436 = vpop.trf.xlu0
    %v437 = vpop.trf.xlu0
    %v438 = vpop.trf.xlu0
    %439 = vrot.lane.b32.xlu0 %v102, 48
    %v440 = vpop.permute.xlu0 %439
    %v443 = vsel %vm295, %v423, 0
    %v446 = vsel %vm295, %v424, 0
    %v449 = vsel %vm295, %v425, 0
    %v452 = vsel %vm295, %v426, 0
    %454 = vmatpush.msra.mxu0 0.0
    %455 = vmatpush.msra.mxu0 0.0
    %456 = vmatpush.msra.mxu0 0.0
    %457 = vmatpush.msra.mxu0 0.0
    %458 = vmatpush.msra.mxu0 0.0
    %459 = vmatpush.msra.mxu0 0.0
    %460 = vmatpush.msra.mxu0 0.0
    %461 = vmatpush.msra.mxu0 0.0
    %462 = vmatpush.msra.mxu0 0.0
    %463 = vmatpush.msra.mxu0 0.0
    %464 = vmatpush.msra.mxu0 0.0
    %465 = vmatpush.msra.mxu0 0.0
    %466 = vmatpush.msra.mxu0 0.0
    %467 = vmatpush.msra.mxu0 0.0
    %468 = vmatpush.msra.mxu0 0.0
    %469 = vmatpush.msra.mxu0 %v440
    %470 = vmatmul.f32.gmra.mxu0 %v443
    %v471 = vpop.f32.mrf.mxu0
    %v472 = vadd.f32 0.0, %v471
    %473 = vmatmul.f32.gmra.mxu0 %v446
    %v474 = vpop.f32.mrf.mxu0
    %v475 = vadd.f32 0.0, %v474
    %476 = vmatmul.f32.gmra.mxu0 %v449
    %v477 = vpop.f32.mrf.mxu0
    %v478 = vadd.f32 0.0, %v477
    %479 = vmatmul.f32.gmra.mxu0 %v452
    %v480 = vpop.f32.mrf.mxu0
    %v481 = vadd.f32 0.0, %v480
    %482 = vdwg.mxu0
    %484 = vrot.lane.b32.xlu0 %v376, 96
    %v485 = vpop.permute.xlu0 %484
    %v486 = vsel %vm77, %v485, 0
    %488 = vmatpush.msra.mxu0 0.0
    %489 = vmatpush.msra.mxu0 0.0
    %490 = vmatpush.msra.mxu0 0.0
    %491 = vmatpush.msra.mxu0 0.0
    %492 = vmatpush.msra.mxu0 0.0
    %493 = vmatpush.msra.mxu0 0.0
    %494 = vmatpush.msra.mxu0 0.0
    %495 = vmatpush.msra.mxu0 0.0
    %496 = vmatpush.msra.mxu0 0.0
    %497 = vmatpush.msra.mxu0 0.0
    %498 = vmatpush.msra.mxu0 0.0
    %499 = vmatpush.msra.mxu0 0.0
    %500 = vmatpush.msra.mxu0 %v481
    %501 = vmatpush.msra.mxu0 %v478
    %502 = vmatpush.msra.mxu0 %v475
    %503 = vmatpush.msra.mxu0 %v472
    %504 = vmatmul.f32.gmra.mxu0 %v486
    %v505 = vpop.f32.mrf.mxu0
    %v506 = vadd.f32 0.0, %v505
    %507 = vdwg.mxu0
    %v508 = vmul.f32 %v506, %v402
    %510 = vrot.lane.b32.xlu0 %v508, 16
    %v511 = vpop.permute.xlu0 %510
    %vm513 = vcmask 261248
    %514 = vst.msk [vmem:[#allocation2] sm:$0xff] %vm513, %v511
    %v515 = vsel %vm77, %v148, -inf
    %516 = vmax.xlane.f32.xlu0 %v515
    %v517 = vpop.xlane.xlu0 %516
    %519 = vset.pattern.permute.xlu0 0
    %520 = vperm.xlu0 %519, %v206
    %v521 = vpop.permute.xlu0 %520
    %v523 = vsub.f32 %v148, %v521
    %v524 = vsub.f32 %v523, %v517
    %v525 = vmul.f32 %v524, 1.442695
    %v526 = vpow.pop %v525
    %v527 = vadd.f32 %v526, 0.0001
    %v528 = vmul.f32 %v527, 0.17677669
    %530 = vset.pattern.permute.xlu0 0
    %531 = vperm.xlu0 %530, %v208
    %v532 = vpop.permute.xlu0 %531
    %v534 = vsub.f32 %v154, %v532
    %v535 = vsub.f32 %v534, %v242
    %v536 = vmul.f32 %v535, 1.442695
    %v537 = vpow.pop %v536
    %v538 = vadd.f32 %v537, 0.0001
    %v539 = vmul.f32 %v538, 0.17677669
    %v540 = vsel %vm77, %v539, 0.0
    %v541 = vrot.slane %v540, 4
    %v542 = vadd.f32 %v540, %v541
    %v543 = vrot.slane %v542, 2
    %v544 = vadd.f32 %v542, %v543
    %v545 = vrot.slane %v544, 1
    %v546 = vadd.f32 %v544, %v545
    %v547 = vmul.f32 %v528, %v546
    %v548 = vsel %vm77, %v547, 0.0
    %549 = vadd.xlane.f32.xlu0 %v548
    %v550 = vpop.xlane.xlu0 %549
    %v551 = vrcp.pop %v550
    %552 = vxpose.xlu0.b32.start [1/16] %v539, 128
    %553 = vxpose.xlu0.b32.cont [2/16] 0.0, 128
    %554 = vxpose.xlu0.b32.cont [3/16] 0.0, 128
    %555 = vxpose.xlu0.b32.cont [4/16] 0.0, 128
    %556 = vxpose.xlu0.b32.cont [5/16] 0.0, 128
    %557 = vxpose.xlu0.b32.cont [6/16] 0.0, 128
    %558 = vxpose.xlu0.b32.cont [7/16] 0.0, 128
    %559 = vxpose.xlu0.b32.cont [8/16] 0.0, 128
    %560 = vxpose.xlu0.b32.cont [9/16] 0.0, 128
    %561 = vxpose.xlu0.b32.cont [10/16] 0.0, 128
    %562 = vxpose.xlu0.b32.cont [11/16] 0.0, 128
    %563 = vxpose.xlu0.b32.cont [12/16] 0.0, 128
    %564 = vxpose.xlu0.b32.cont [13/16] 0.0, 128
    %565 = vxpose.xlu0.b32.cont [14/16] 0.0, 128
    %566 = vxpose.xlu0.b32.cont [15/16] 0.0, 128
    %567 = vxpose.xlu0.b32.end [16/16] 0.0, 128
    %v568 = vpop.trf.xlu0
    %v569 = vpop.trf.xlu0
    %v570 = vpop.trf.xlu0
    %v571 = vpop.trf.xlu0
    %v572 = vpop.trf.xlu0
    %v573 = vpop.trf.xlu0
    %v574 = vpop.trf.xlu0
    %v575 = vpop.trf.xlu0
    %v576 = vpop.trf.xlu0
    %v577 = vpop.trf.xlu0
    %v578 = vpop.trf.xlu0
    %v579 = vpop.trf.xlu0
    %v580 = vpop.trf.xlu0
    %v581 = vpop.trf.xlu0
    %v582 = vpop.trf.xlu0
    %v583 = vpop.trf.xlu0
    %584 = vrot.lane.b32.xlu0 %v105, 64
    %v585 = vpop.permute.xlu0 %584
    %v588 = vsel %vm295, %v568, 0
    %v591 = vsel %vm295, %v569, 0
    %v594 = vsel %vm295, %v570, 0
    %v597 = vsel %vm295, %v571, 0
    %599 = vmatpush.msra.mxu0 0.0
    %600 = vmatpush.msra.mxu0 0.0
    %601 = vmatpush.msra.mxu0 0.0
    %602 = vmatpush.msra.mxu0 0.0
    %603 = vmatpush.msra.mxu0 0.0
    %604 = vmatpush.msra.mxu0 0.0
    %605 = vmatpush.msra.mxu0 0.0
    %606 = vmatpush.msra.mxu0 0.0
    %607 = vmatpush.msra.mxu0 0.0
    %608 = vmatpush.msra.mxu0 0.0
    %609 = vmatpush.msra.mxu0 0.0
    %610 = vmatpush.msra.mxu0 0.0
    %611 = vmatpush.msra.mxu0 0.0
    %612 = vmatpush.msra.mxu0 0.0
    %613 = vmatpush.msra.mxu0 0.0
    %614 = vmatpush.msra.mxu0 %v585
    %615 = vmatmul.f32.gmra.mxu0 %v588
    %v616 = vpop.f32.mrf.mxu0
    %v617 = vadd.f32 0.0, %v616
    %618 = vmatmul.f32.gmra.mxu0 %v591
    %v619 = vpop.f32.mrf.mxu0
    %v620 = vadd.f32 0.0, %v619
    %621 = vmatmul.f32.gmra.mxu0 %v594
    %v622 = vpop.f32.mrf.mxu0
    %v623 = vadd.f32 0.0, %v622
    %624 = vmatmul.f32.gmra.mxu0 %v597
    %v625 = vpop.f32.mrf.mxu0
    %v626 = vadd.f32 0.0, %v625
    %627 = vdwg.mxu0
    %v629 = vsel %vm77, %v528, 0
    %631 = vmatpush.msra.mxu0 0.0
    %632 = vmatpush.msra.mxu0 0.0
    %633 = vmatpush.msra.mxu0 0.0
    %634 = vmatpush.msra.mxu0 0.0
    %635 = vmatpush.msra.mxu0 0.0
    %636 = vmatpush.msra.mxu0 0.0
    %637 = vmatpush.msra.mxu0 0.0
    %638 = vmatpush.msra.mxu0 0.0
    %639 = vmatpush.msra.mxu0 0.0
    %640 = vmatpush.msra.mxu0 0.0
    %641 = vmatpush.msra.mxu0 0.0
    %642 = vmatpush.msra.mxu0 0.0
    %643 = vmatpush.msra.mxu0 %v626
    %644 = vmatpush.msra.mxu0 %v623
    %645 = vmatpush.msra.mxu0 %v620
    %646 = vmatpush.msra.mxu0 %v617
    %647 = vmatmul.f32.gmra.mxu0 %v629
    %v648 = vpop.f32.mrf.mxu0
    %v649 = vadd.f32 0.0, %v648
    %650 = vdwg.mxu0
    %v651 = vmul.f32 %v649, %v551
    %652 = vst.msk [vmem:[#allocation2 + $0x8] sm:$0xff] %vm361, %v651
    %v653 = vsel %vm363, %v148, -inf
    %654 = vmax.xlane.f32.xlu0 %v653
    %v655 = vpop.xlane.xlu0 %654
    %656 = vset.pattern.permute.xlu0 1
    %657 = vperm.xlu0 %656, %v206
    %v658 = vpop.permute.xlu0 %657
    %v660 = vsub.f32 %v148, %v658
    %v661 = vsub.f32 %v660, %v655
    %v662 = vmul.f32 %v661, 1.442695
    %v663 = vpow.pop %v662
    %v664 = vadd.f32 %v663, 0.0001
    %v665 = vmul.f32 %v664, 0.17677669
    %666 = vset.pattern.permute.xlu0 1
    %667 = vperm.xlu0 %666, %v208
    %v668 = vpop.permute.xlu0 %667
    %v670 = vsub.f32 %v154, %v668
    %v671 = vsub.f32 %v670, %v242
    %v672 = vmul.f32 %v671, 1.442695
    %v673 = vpow.pop %v672
    %v674 = vadd.f32 %v673, 0.0001
    %v675 = vmul.f32 %v674, 0.17677669
    %v676 = vsel %vm363, %v675, 0.0
    %v677 = vrot.slane %v676, 4
    %v678 = vadd.f32 %v676, %v677
    %v679 = vrot.slane %v678, 2
    %v680 = vadd.f32 %v678, %v679
    %v681 = vrot.slane %v680, 1
    %v682 = vadd.f32 %v680, %v681
    %v683 = vmul.f32 %v665, %v682
    %685 = vrot.lane.b32.xlu0 %v683, 96
    %v686 = vpop.permute.xlu0 %685
    %v688 = vsel %vm77, %v686, 0.0
    %689 = vadd.xlane.f32.xlu0 %v688
    %v690 = vpop.xlane.xlu0 %689
    %v691 = vrcp.pop %v690
    %693 = vrot.lane.b32.xlu0 %v675, 96
    %v694 = vpop.permute.xlu0 %693
    %696 = vxpose.xlu0.b32.start [1/16] %v694, 128
    %697 = vxpose.xlu0.b32.cont [2/16] 0.0, 128
    %698 = vxpose.xlu0.b32.cont [3/16] 0.0, 128
    %699 = vxpose.xlu0.b32.cont [4/16] 0.0, 128
    %700 = vxpose.xlu0.b32.cont [5/16] 0.0, 128
    %701 = vxpose.xlu0.b32.cont [6/16] 0.0, 128
    %702 = vxpose.xlu0.b32.cont [7/16] 0.0, 128
    %703 = vxpose.xlu0.b32.cont [8/16] 0.0, 128
    %704 = vxpose.xlu0.b32.cont [9/16] 0.0, 128
    %705 = vxpose.xlu0.b32.cont [10/16] 0.0, 128
    %706 = vxpose.xlu0.b32.cont [11/16] 0.0, 128
    %707 = vxpose.xlu0.b32.cont [12/16] 0.0, 128
    %708 = vxpose.xlu0.b32.cont [13/16] 0.0, 128
    %709 = vxpose.xlu0.b32.cont [14/16] 0.0, 128
    %710 = vxpose.xlu0.b32.cont [15/16] 0.0, 128
    %711 = vxpose.xlu0.b32.end [16/16] 0.0, 128
    %v712 = vpop.trf.xlu0
    %v713 = vpop.trf.xlu0
    %v714 = vpop.trf.xlu0
    %v715 = vpop.trf.xlu0
    %v716 = vpop.trf.xlu0
    %v717 = vpop.trf.xlu0
    %v718 = vpop.trf.xlu0
    %v719 = vpop.trf.xlu0
    %v720 = vpop.trf.xlu0
    %v721 = vpop.trf.xlu0
    %v722 = vpop.trf.xlu0
    %v723 = vpop.trf.xlu0
    %v724 = vpop.trf.xlu0
    %v725 = vpop.trf.xlu0
    %v726 = vpop.trf.xlu0
    %v727 = vpop.trf.xlu0
    %728 = vrot.lane.b32.xlu0 %v105, 48
    %v729 = vpop.permute.xlu0 %728
    %v732 = vsel %vm295, %v712, 0
    %v735 = vsel %vm295, %v713, 0
    %v738 = vsel %vm295, %v714, 0
    %v741 = vsel %vm295, %v715, 0
    %743 = vmatpush.msra.mxu0 0.0
    %744 = vmatpush.msra.mxu0 0.0
    %745 = vmatpush.msra.mxu0 0.0
    %746 = vmatpush.msra.mxu0 0.0
    %747 = vmatpush.msra.mxu0 0.0
    %748 = vmatpush.msra.mxu0 0.0
    %749 = vmatpush.msra.mxu0 0.0
    %750 = vmatpush.msra.mxu0 0.0
    %751 = vmatpush.msra.mxu0 0.0
    %752 = vmatpush.msra.mxu0 0.0
    %753 = vmatpush.msra.mxu0 0.0
    %754 = vmatpush.msra.mxu0 0.0
    %755 = vmatpush.msra.mxu0 0.0
    %756 = vmatpush.msra.mxu0 0.0
    %757 = vmatpush.msra.mxu0 0.0
    %758 = vmatpush.msra.mxu0 %v729
    %759 = vmatmul.f32.gmra.mxu0 %v732
    %v760 = vpop.f32.mrf.mxu0
    %v761 = vadd.f32 0.0, %v760
    %762 = vmatmul.f32.gmra.mxu0 %v735
    %v763 = vpop.f32.mrf.mxu0
    %v764 = vadd.f32 0.0, %v763
    %765 = vmatmul.f32.gmra.mxu0 %v738
    %v766 = vpop.f32.mrf.mxu0
    %v767 = vadd.f32 0.0, %v766
    %768 = vmatmul.f32.gmra.mxu0 %v741
    %v769 = vpop.f32.mrf.mxu0
    %v770 = vadd.f32 0.0, %v769
    %771 = vdwg.mxu0
    %773 = vrot.lane.b32.xlu0 %v665, 96
    %v774 = vpop.permute.xlu0 %773
    %v775 = vsel %vm77, %v774, 0
    %777 = vmatpush.msra.mxu0 0.0
    %778 = vmatpush.msra.mxu0 0.0
    %779 = vmatpush.msra.mxu0 0.0
    %780 = vmatpush.msra.mxu0 0.0
    %781 = vmatpush.msra.mxu0 0.0
    %782 = vmatpush.msra.mxu0 0.0
    %783 = vmatpush.msra.mxu0 0.0
    %784 = vmatpush.msra.mxu0 0.0
    %785 = vmatpush.msra.mxu0 0.0
    %786 = vmatpush.msra.mxu0 0.0
    %787 = vmatpush.msra.mxu0 0.0
    %788 = vmatpush.msra.mxu0 0.0
    %789 = vmatpush.msra.mxu0 %v770
    %790 = vmatpush.msra.mxu0 %v767
    %791 = vmatpush.msra.mxu0 %v764
    %792 = vmatpush.msra.mxu0 %v761
    %793 = vmatmul.f32.gmra.mxu0 %v775
    %v794 = vpop.f32.mrf.mxu0
    %v795 = vadd.f32 0.0, %v794
    %796 = vdwg.mxu0
    %v797 = vmul.f32 %v795, %v691
    %799 = vrot.lane.b32.xlu0 %v797, 16
    %v800 = vpop.permute.xlu0 %799
    %802 = vst.msk [vmem:[#allocation2 + $0x8] sm:$0xff] %vm513, %v800
    %v803 = vld [vmem:[#allocation2] sm:$0xff]
    %v804 = vld [vmem:[#allocation2 + $0x8] sm:$0xff]
    %v805 = vld [vmem:[#allocation8] sm:$0xff]
    %v806 = vld [vmem:[#allocation8 + $0x8] sm:$0xff]
    %v807 = vld [vmem:[#allocation8 + $0x10] sm:$0xff]
    %v808 = vld [vmem:[#allocation8 + $0x18] sm:$0xff]
    %v809 = vld [vmem:[%s5] sm:$0x1]
    %v811 = vperm.slane %v809, 0
    %v814 = vsel %vm77, %v803, 0
    %v817 = vsel %vm77, %v804, 0
    %819 = vmatpush.msra.mxu0 0.0
    %820 = vmatpush.msra.mxu0 0.0
    %821 = vmatpush.msra.mxu0 0.0
    %822 = vmatpush.msra.mxu0 0.0
    %823 = vmatpush.msra.mxu0 0.0
    %824 = vmatpush.msra.mxu0 0.0
    %825 = vmatpush.msra.mxu0 0.0
    %826 = vmatpush.msra.mxu0 0.0
    %827 = vmatpush.msra.mxu0 0.0
    %828 = vmatpush.msra.mxu0 0.0
    %829 = vmatpush.msra.mxu0 0.0
    %830 = vmatpush.msra.mxu0 0.0
    %831 = vmatpush.msra.mxu0 %v808
    %832 = vmatpush.msra.mxu0 %v807
    %833 = vmatpush.msra.mxu0 %v806
    %834 = vmatpush.msra.mxu0 %v805
    %835 = vmatmul.f32.gmra.mxu0 %v814
    %v836 = vpop.f32.mrf.mxu0
    %v837 = vadd.f32 %v811, %v836
    %838 = vmatmul.f32.gmra.mxu0 %v817
    %v839 = vpop.f32.mrf.mxu0
    %v840 = vadd.f32 %v811, %v839
    %841 = vdwg.mxu0
    %842 = vst.msk [vmem:[#allocation9] sm:$0xff] %vm77, %v837
    %843 = vst.msk [vmem:[#allocation9 + $0x8] sm:$0xff] %vm77, %v840
    // Predicated region
    $region38: #{performer_self_attention.1} parent=1 // pred_check
      _
    $region39: #{performer_self_attention.1} parent=1 // pred_check_branch
      %845 = sbr.rel (0) target = $region41
    $region40: #{performer_self_attention.1} parent=1 // pred_region
      %847 = vsyncadd [#allocation5], 0
      %s848 = sshll.u32 [#allocation9], 4
      %s849 = int_to_ptr.vmem [resolvable:$true] %s848
      %s850 = sshll.u32 %s6, 4
      %s851 = int_to_ptr.hbm [resolvable:$true] %s850
      %856 = dma.vmem_to_hbm [thread:$0]  %s849, 256, %s851, [#allocation5], 128, 128, 8
    $region41: #{performer_self_attention.1} parent=1 // pred_fallthru
      _
    // Predicated region
    $region42: #{performer_self_attention.1} parent=1 // pred_check
      _
    $region43: #{performer_self_attention.1} parent=1 // pred_check_branch
      %858 = sbr.rel (0) target = $region45
    $region44: #{performer_self_attention.1} parent=1 // pred_region
      %860 = dma.done [#allocation5], 256
    $region45: #{performer_self_attention.1} parent=1 // pred_fallthru
      _
    %861 = vsyncpa [#allocation4], 1
    %862 = vsyncpa [#allocation7], 1
    %863 = vsyncpa [#allocation5], 1

</llo_original>
